<compile_context>
chip_gen: v7x
topology: tpu7x:2x2x1
jax: 0.10.0
libtpu: 0.0.40
codegen_flags: <defaults>
</compile_context>

<pallas_src>
import functools

import jax
import jax.numpy as jnp
from jax.experimental import pallas as pl
from jax.experimental.pallas import tpu as pltpu

_LANE = 128
_SUBLANE = 8


def _round_up(x, m):
    return ((x + m - 1) // m) * m


def _lane_packing(num_units):
    """Return (u_pad, pack): pad features to u_pad and fold `pack` rows/lane."""
    if num_units >= _LANE:
        return _round_up(num_units, _LANE), 1
    u_pad = pl.next_power_of_2(num_units)      # power of two <= 128 divides 128
    return u_pad, _LANE // u_pad


def _highway_kernel(x_ref, w_ref, b_ref, o_ref, *, num_layers, compute_dtype,
                    gate_dtype):
    """One grid step: push (bm, PU) packed rows through all highway layers.

    x_ref: (bm, PU)        packed input rows (4 original rows per lane row)
    w_ref: (L, PU, 2*PU)   block-diagonal fused [linear | gate] weights
    b_ref: (L, 1, 2*PU)    fused [linear | gate] biases (f32)
    o_ref: (bm, PU)
    """
    pu = o_ref.shape[-1]
    out = x_ref[...].astype(jnp.float32)
    for l in range(num_layers):                       # small & static -> unrolled
        z = jnp.dot(out.astype(compute_dtype), w_ref[l],
                    preferred_element_type=jnp.float32) + b_ref[l]
        h = jnp.maximum(z[:, :pu], 0.0)               # relu(linear(out))
        zg = z[:, pu:]
        if gate_dtype != jnp.float32:                 # opt-in bf16 EUP path (v6e/v7x)
            zg = zg.astype(gate_dtype)
        # sigmoid(x) == 0.5*tanh(0.5*x) + 0.5 : one EUP transcendental per
        # element instead of exp + reciprocal -> keeps EUP off the critical
        # path on v6e/v7x now that the wrapper HBM passes are gone.
        t = 0.5 * jnp.tanh(0.5 * zg).astype(jnp.float32) + 0.5
        out = out + t * (h - out)                     # == h*t + out*(1-t)
    o_ref[...] = out.astype(o_ref.dtype)


def pack_highway_params(w_lin, b_lin, w_gate, b_gate,
                        *, compute_dtype=jnp.bfloat16):
    """Pack PyTorch-layout params into fused, lane-dense, block-diagonal form.

    Call once at parameter-load time (not per forward call).

    Args:
      w_lin, w_gate: (L, U, U) PyTorch (out, in) Linear weights
      b_lin, b_gate: (L, U)    biases
    Returns:
      w_packed: (L, PU, 2*PU) compute_dtype, PU = pack * u_pad
      b_packed: (L, 1, 2*PU)  float32
    """
    L, U, _ = w_lin.shape
    u_pad, pack = _lane_packing(U)
    pu = pack * u_pad
    du = u_pad - U

    # (out, in) -> (in, out) so the kernel computes x @ W + b; zero-pad features.
    # The zero padding keeps h == 0 and out == 0 in padded lanes, so the gate's
    # t=0.5 there is benign -- preserve this invariant if the packing changes.
    wl = jnp.pad(jnp.transpose(w_lin, (0, 2, 1)), ((0, 0), (0, du), (0, du)))
    wg = jnp.pad(jnp.transpose(w_gate, (0, 2, 1)), ((0, 0), (0, du), (0, du)))
    bl = jnp.pad(b_lin, ((0, 0), (0, du)))
    bg = jnp.pad(b_gate, ((0, 0), (0, du)))

    # Block-diagonal replication over the `pack` row-groups folded into lanes.
    eye = jnp.eye(pack, dtype=wl.dtype)
    wl_bd = jnp.einsum("pq,luv->lpuqv", eye, wl).reshape(L, pu, pu)
    wg_bd = jnp.einsum("pq,luv->lpuqv", eye, wg).reshape(L, pu, pu)
    w_packed = jnp.concatenate([wl_bd, wg_bd], axis=-1)          # (L, PU, 2PU)

    b_packed = jnp.concatenate(
        [jnp.tile(bl, (1, pack)), jnp.tile(bg, (1, pack))],
        axis=-1).reshape(L, 1, 2 * pu)

    return w_packed.astype(compute_dtype), b_packed.astype(jnp.float32)


def _choose_block(mp, block_rows):
    """Pick (bm, n_blocks): bm multiple of 8, grid >=2 (even) steps when possible."""
    if mp <= _SUBLANE:
        return mp, 1                               # one whole-array block
    nb = max(pl.cdiv(mp, block_rows), 2)           # >=2 so both v7x cores get work
    if nb % 2:
        nb += 1                                    # even split across the 2 TCs
    bm = min(_round_up(pl.cdiv(mp, nb), _SUBLANE), _round_up(mp, _SUBLANE))
    return bm, pl.cdiv(mp, bm)


def highwaynet_forward(x, w_packed, b_packed, *, block_rows=4096,
                       gate_dtype=jnp.float32):
    """Highway network forward.

    Args:
      x:        (B, T, U) float32
      w_packed: (L, PU, 2*PU) from pack_highway_params
      b_packed: (L, 1, 2*PU)  from pack_highway_params
      block_rows: target packed rows per grid step.  4096 uses ~28 MiB VMEM
        (I/O double buffers + f32 intermediates + resident weights); keep at or
        below ~4096 on v7x (64 MiB physical VMEM).
      gate_dtype: dtype of the gate tanh.  jnp.bfloat16 halves EUP time on
        v6e/v7x (bf16 EUP path); keep float32 on v5e (no bf16 VPU/EUP).
    Returns:
      (B, T, U) with x.dtype
    """
    B, T, U = x.shape
    L, PU, PU2 = w_packed.shape
    u_pad, pack = _lane_packing(U)
    assert PU == pack * u_pad and PU2 == 2 * PU, "packed params do not match x"

    M = B * T
    xf = x.reshape(M, U)

    # Pad ONLY to a multiple of `pack` rows (<= pack-1 rows) and to u_pad
    # features (0 when U is a power of two).  In the common case (M % pack == 0
    # and U a power of two) this is skipped and xp is a pure reshape -- no extra
    # HBM pass around the HBM-bound kernel.  Ragged last grid blocks are left to
    # Pallas: OOB reads land in discarded rows, OOB writes are masked, and the
    # math is row-independent, so correctness is unaffected.
    row_pad = (-M) % pack
    feat_pad = u_pad - U
    if row_pad or feat_pad:
        xf = jnp.pad(xf, ((0, row_pad), (0, feat_pad)))
    mp = (M + row_pad) // pack
    xp = xf.reshape(mp, PU)                         # lane-dense packing (reshape only)

    bm, n_blocks = _choose_block(mp, block_rows)

    # VMEM budget: in/out double buffers ~2 KiB/packed-row + live f32
    # intermediates ~3 KiB/packed-row + ~0.6 MiB resident weights/biases.
    vmem_bytes = int(min(max(bm * 6 * 1024 + (4 << 20), 16 << 20), 48 << 20))

    kernel = functools.partial(_highway_kernel, num_layers=L,
                               compute_dtype=w_packed.dtype,
                               gate_dtype=gate_dtype)

    out = pl.pallas_call(
        kernel,
        out_shape=jax.ShapeDtypeStruct((mp, PU), x.dtype),
        grid_spec=pltpu.PrefetchScalarGridSpec(
            num_scalar_prefetch=0,
            grid=(n_blocks,),
            in_specs=[
                pl.BlockSpec((bm, PU), lambda i: (i, 0)),
                # Constant index maps: weights/biases are DMA'd once and stay
                # resident in VMEM for the whole grid.
                pl.BlockSpec((L, PU, 2 * PU), lambda i: (0, 0, 0)),
                pl.BlockSpec((L, 1, 2 * PU), lambda i: (0, 0, 0)),
            ],
            out_specs=pl.BlockSpec((bm, PU), lambda i: (i, 0)),
        ),
        compiler_params=pltpu.CompilerParams(
            dimension_semantics=("parallel",),
            vmem_limit_bytes=vmem_bytes),
        # NOTE: input_output_aliases={0: 0} was considered but left out: xp is
        # a bitcast of the non-donated entry parameter x, so the alias would
        # force XLA to insert a defensive copy (an extra HBM pass).
    )(xp, w_packed, b_packed)

    if row_pad or feat_pad:
        out = out.reshape(mp * pack, u_pad)[:M, :U]
    return out.reshape(B, T, U)


def reference_forward(x, w_lin, b_lin, w_gate, b_gate):
    """Pure-JAX reference matching the PyTorch module semantics (f32)."""
    out = x
    L = w_lin.shape[0]
    for l in range(L):
        h = jax.nn.relu(jnp.einsum("btu,vu->btv", out, w_lin[l]) + b_lin[l])
        t = jax.nn.sigmoid(jnp.einsum("btu,vu->btv", out, w_gate[l]) + b_gate[l])
        out = h * t + out * (1.0 - t)
    return out


if __name__ == "__main__":
    num_units = 32
    num_layers = 4
    batch, seq = 2, 8

    key = jax.random.PRNGKey(0)
    k_x, k_w1, k_b1, k_w2, k_b2 = jax.random.split(key, 5)

    # Deterministic synthetic parameters (PyTorch Linear-like uniform init).
    bound = 1.0 / jnp.sqrt(num_units)
    x = jax.random.normal(k_x, (batch, seq, num_units), dtype=jnp.float32)
    w_lin = jax.random.uniform(k_w1, (num_layers, num_units, num_units),
                               minval=-bound, maxval=bound, dtype=jnp.float32)
    b_lin = jax.random.uniform(k_b1, (num_layers, num_units),
                               minval=-bound, maxval=bound, dtype=jnp.float32)
    w_gate = jax.random.uniform(k_w2, (num_layers, num_units, num_units),
                                minval=-bound, maxval=bound, dtype=jnp.float32)
    b_gate = jax.random.uniform(k_b2, (num_layers, num_units),
                                minval=-bound, maxval=bound, dtype=jnp.float32)

    # Pack parameters once (fused + block-diagonal + bf16 matmul operands).
    w_packed, b_packed = pack_highway_params(
        w_lin, b_lin, w_gate, b_gate, compute_dtype=jnp.bfloat16)

    fwd = jax.jit(highwaynet_forward)
    out = fwd(x, w_packed, b_packed)
    out = jax.block_until_ready(out)

    ref = reference_forward(x, w_lin, b_lin, w_gate, b_gate)
    assert out.shape == (batch, seq, num_units)
    # bf16 matmul operands with f32 accumulation / f32 residual path: loosen
    # the tolerance accordingly (observed error is ~1e-3 scale).
    assert jnp.allclose(out, ref, atol=5e-2, rtol=5e-2), (
        "Pallas kernel output diverged from reference")

    print("KERNEL_OK")
</pallas_src>

<mosaic_0001>
module attributes {stable_mosaic.version = 11 : i64} {
  func.func @_highway_kernel(%arg0: i32, %arg1: memref<4x128xf32, #tpu.memory_space<vmem>>, %arg2: memref<4x128x256xbf16, #tpu.memory_space<vmem>>, %arg3: memref<4x1x256xf32, #tpu.memory_space<vmem>>, %arg4: memref<4x128xf32, #tpu.memory_space<vmem>>) attributes {dimension_semantics = [#tpu.dimension_semantics<parallel>], iteration_bounds = array<i64: 1>, scalar_prefetch = 0 : i64, scratch_operands = 0 : i64, tpu.core_type = #tpu.core_type<tc>, window_params = [{transform_indices = @transform_0, window_bounds = array<i64: 4, 128>}, {pipeline_mode = #tpu.pipeline_mode<synchronous>, transform_indices = @transform_1, window_bounds = array<i64: 4, 128, 256>}, {pipeline_mode = #tpu.pipeline_mode<synchronous>, transform_indices = @transform_2, window_bounds = array<i64: 4, 1, 256>}, {transform_indices = @transform_3, window_bounds = array<i64: 4, 128>}]} {
    %c0 = arith.constant 0 : index
    %c0_0 = arith.constant 0 : index
    %0 = vector.load %arg1[%c0, %c0_0] : memref<4x128xf32, #tpu.memory_space<vmem>>, vector<4x128xf32>
    %1 = arith.truncf %0 : vector<4x128xf32> to vector<4x128xbf16>
    %c0_1 = arith.constant 0 : index
    %c0_2 = arith.constant 0 : index
    %c0_3 = arith.constant 0 : index
    %2 = vector.load %arg2[%c0_1, %c0_2, %c0_3] : memref<4x128x256xbf16, #tpu.memory_space<vmem>>, vector<1x128x256xbf16>
    %3 = vector.shape_cast %2 : vector<1x128x256xbf16> to vector<128x256xbf16>
    %cst = arith.constant dense<0.000000e+00> : vector<4x256xf32>
    %4 = tpu.matmul %1, %3, %cst {dimension_numbers = #tpu.dot_dimension_numbers<[1], [0], [0], [1], [0, 0, 1, 1], [], []>} : vector<4x128xbf16>, vector<128x256xbf16>, vector<4x256xf32> -> vector<4x256xf32>
    %c0_4 = arith.constant 0 : index
    %c0_5 = arith.constant 0 : index
    %c0_6 = arith.constant 0 : index
    %5 = vector.load %arg3[%c0_4, %c0_5, %c0_6] : memref<4x1x256xf32, #tpu.memory_space<vmem>>, vector<1x1x256xf32>
    %6 = vector.shape_cast %5 : vector<1x1x256xf32> to vector<1x256xf32>
    %7 = vector.broadcast %6 : vector<1x256xf32> to vector<4x256xf32>
    %8 = arith.addf %4, %7 : vector<4x256xf32>
    %9 = vector.extract_strided_slice %8 {offsets = [0, 0], sizes = [4, 128], strides = [1, 1]} : vector<4x256xf32> to vector<4x128xf32>
    %cst_7 = arith.constant 0.000000e+00 : f32
    %10 = vector.broadcast %cst_7 : f32 to vector<4x128xf32>
    %11 = arith.maximumf %9, %10 : vector<4x128xf32>
    %12 = vector.extract_strided_slice %8 {offsets = [0, 128], sizes = [4, 128], strides = [1, 1]} : vector<4x256xf32> to vector<4x128xf32>
    %cst_8 = arith.constant 5.000000e-01 : f32
    %13 = vector.broadcast %cst_8 : f32 to vector<4x128xf32>
    %14 = arith.mulf %13, %12 : vector<4x128xf32>
    %15 = math.tanh %14 : vector<4x128xf32>
    %cst_9 = arith.constant 5.000000e-01 : f32
    %16 = vector.broadcast %cst_9 : f32 to vector<4x128xf32>
    %17 = arith.mulf %16, %15 : vector<4x128xf32>
    %cst_10 = arith.constant 5.000000e-01 : f32
    %18 = vector.broadcast %cst_10 : f32 to vector<4x128xf32>
    %19 = arith.addf %17, %18 : vector<4x128xf32>
    %20 = arith.subf %11, %0 : vector<4x128xf32>
    %21 = arith.mulf %19, %20 : vector<4x128xf32>
    %22 = arith.addf %0, %21 : vector<4x128xf32>
    %23 = arith.truncf %22 : vector<4x128xf32> to vector<4x128xbf16>
    %c1 = arith.constant 1 : index
    %c0_11 = arith.constant 0 : index
    %c0_12 = arith.constant 0 : index
    %24 = vector.load %arg2[%c1, %c0_11, %c0_12] : memref<4x128x256xbf16, #tpu.memory_space<vmem>>, vector<1x128x256xbf16>
    %25 = vector.shape_cast %24 : vector<1x128x256xbf16> to vector<128x256xbf16>
    %cst_13 = arith.constant dense<0.000000e+00> : vector<4x256xf32>
    %26 = tpu.matmul %23, %25, %cst_13 {dimension_numbers = #tpu.dot_dimension_numbers<[1], [0], [0], [1], [0, 0, 1, 1], [], []>} : vector<4x128xbf16>, vector<128x256xbf16>, vector<4x256xf32> -> vector<4x256xf32>
    %c1_14 = arith.constant 1 : index
    %c0_15 = arith.constant 0 : index
    %c0_16 = arith.constant 0 : index
    %27 = vector.load %arg3[%c1_14, %c0_15, %c0_16] : memref<4x1x256xf32, #tpu.memory_space<vmem>>, vector<1x1x256xf32>
    %28 = vector.shape_cast %27 : vector<1x1x256xf32> to vector<1x256xf32>
    %29 = vector.broadcast %28 : vector<1x256xf32> to vector<4x256xf32>
    %30 = arith.addf %26, %29 : vector<4x256xf32>
    %31 = vector.extract_strided_slice %30 {offsets = [0, 0], sizes = [4, 128], strides = [1, 1]} : vector<4x256xf32> to vector<4x128xf32>
    %cst_17 = arith.constant 0.000000e+00 : f32
    %32 = vector.broadcast %cst_17 : f32 to vector<4x128xf32>
    %33 = arith.maximumf %31, %32 : vector<4x128xf32>
    %34 = vector.extract_strided_slice %30 {offsets = [0, 128], sizes = [4, 128], strides = [1, 1]} : vector<4x256xf32> to vector<4x128xf32>
    %cst_18 = arith.constant 5.000000e-01 : f32
    %35 = vector.broadcast %cst_18 : f32 to vector<4x128xf32>
    %36 = arith.mulf %35, %34 : vector<4x128xf32>
    %37 = math.tanh %36 : vector<4x128xf32>
    %cst_19 = arith.constant 5.000000e-01 : f32
    %38 = vector.broadcast %cst_19 : f32 to vector<4x128xf32>
    %39 = arith.mulf %38, %37 : vector<4x128xf32>
    %cst_20 = arith.constant 5.000000e-01 : f32
    %40 = vector.broadcast %cst_20 : f32 to vector<4x128xf32>
    %41 = arith.addf %39, %40 : vector<4x128xf32>
    %42 = arith.subf %33, %22 : vector<4x128xf32>
    %43 = arith.mulf %41, %42 : vector<4x128xf32>
    %44 = arith.addf %22, %43 : vector<4x128xf32>
    %45 = arith.truncf %44 : vector<4x128xf32> to vector<4x128xbf16>
    %c2 = arith.constant 2 : index
    %c0_21 = arith.constant 0 : index
    %c0_22 = arith.constant 0 : index
    %46 = vector.load %arg2[%c2, %c0_21, %c0_22] : memref<4x128x256xbf16, #tpu.memory_space<vmem>>, vector<1x128x256xbf16>
    %47 = vector.shape_cast %46 : vector<1x128x256xbf16> to vector<128x256xbf16>
    %cst_23 = arith.constant dense<0.000000e+00> : vector<4x256xf32>
    %48 = tpu.matmul %45, %47, %cst_23 {dimension_numbers = #tpu.dot_dimension_numbers<[1], [0], [0], [1], [0, 0, 1, 1], [], []>} : vector<4x128xbf16>, vector<128x256xbf16>, vector<4x256xf32> -> vector<4x256xf32>
    %c2_24 = arith.constant 2 : index
    %c0_25 = arith.constant 0 : index
    %c0_26 = arith.constant 0 : index
    %49 = vector.load %arg3[%c2_24, %c0_25, %c0_26] : memref<4x1x256xf32, #tpu.memory_space<vmem>>, vector<1x1x256xf32>
    %50 = vector.shape_cast %49 : vector<1x1x256xf32> to vector<1x256xf32>
    %51 = vector.broadcast %50 : vector<1x256xf32> to vector<4x256xf32>
    %52 = arith.addf %48, %51 : vector<4x256xf32>
    %53 = vector.extract_strided_slice %52 {offsets = [0, 0], sizes = [4, 128], strides = [1, 1]} : vector<4x256xf32> to vector<4x128xf32>
    %cst_27 = arith.constant 0.000000e+00 : f32
    %54 = vector.broadcast %cst_27 : f32 to vector<4x128xf32>
    %55 = arith.maximumf %53, %54 : vector<4x128xf32>
    %56 = vector.extract_strided_slice %52 {offsets = [0, 128], sizes = [4, 128], strides = [1, 1]} : vector<4x256xf32> to vector<4x128xf32>
    %cst_28 = arith.constant 5.000000e-01 : f32
    %57 = vector.broadcast %cst_28 : f32 to vector<4x128xf32>
    %58 = arith.mulf %57, %56 : vector<4x128xf32>
    %59 = math.tanh %58 : vector<4x128xf32>
    %cst_29 = arith.constant 5.000000e-01 : f32
    %60 = vector.broadcast %cst_29 : f32 to vector<4x128xf32>
    %61 = arith.mulf %60, %59 : vector<4x128xf32>
    %cst_30 = arith.constant 5.000000e-01 : f32
    %62 = vector.broadcast %cst_30 : f32 to vector<4x128xf32>
    %63 = arith.addf %61, %62 : vector<4x128xf32>
    %64 = arith.subf %55, %44 : vector<4x128xf32>
    %65 = arith.mulf %63, %64 : vector<4x128xf32>
    %66 = arith.addf %44, %65 : vector<4x128xf32>
    %67 = arith.truncf %66 : vector<4x128xf32> to vector<4x128xbf16>
    %c3 = arith.constant 3 : index
    %c0_31 = arith.constant 0 : index
    %c0_32 = arith.constant 0 : index
    %68 = vector.load %arg2[%c3, %c0_31, %c0_32] : memref<4x128x256xbf16, #tpu.memory_space<vmem>>, vector<1x128x256xbf16>
    %69 = vector.shape_cast %68 : vector<1x128x256xbf16> to vector<128x256xbf16>
    %cst_33 = arith.constant dense<0.000000e+00> : vector<4x256xf32>
    %70 = tpu.matmul %67, %69, %cst_33 {dimension_numbers = #tpu.dot_dimension_numbers<[1], [0], [0], [1], [0, 0, 1, 1], [], []>} : vector<4x128xbf16>, vector<128x256xbf16>, vector<4x256xf32> -> vector<4x256xf32>
    %c3_34 = arith.constant 3 : index
    %c0_35 = arith.constant 0 : index
    %c0_36 = arith.constant 0 : index
    %71 = vector.load %arg3[%c3_34, %c0_35, %c0_36] : memref<4x1x256xf32, #tpu.memory_space<vmem>>, vector<1x1x256xf32>
    %72 = vector.shape_cast %71 : vector<1x1x256xf32> to vector<1x256xf32>
    %73 = vector.broadcast %72 : vector<1x256xf32> to vector<4x256xf32>
    %74 = arith.addf %70, %73 : vector<4x256xf32>
    %75 = vector.extract_strided_slice %74 {offsets = [0, 0], sizes = [4, 128], strides = [1, 1]} : vector<4x256xf32> to vector<4x128xf32>
    %cst_37 = arith.constant 0.000000e+00 : f32
    %76 = vector.broadcast %cst_37 : f32 to vector<4x128xf32>
    %77 = arith.maximumf %75, %76 : vector<4x128xf32>
    %78 = vector.extract_strided_slice %74 {offsets = [0, 128], sizes = [4, 128], strides = [1, 1]} : vector<4x256xf32> to vector<4x128xf32>
    %cst_38 = arith.constant 5.000000e-01 : f32
    %79 = vector.broadcast %cst_38 : f32 to vector<4x128xf32>
    %80 = arith.mulf %79, %78 : vector<4x128xf32>
    %81 = math.tanh %80 : vector<4x128xf32>
    %cst_39 = arith.constant 5.000000e-01 : f32
    %82 = vector.broadcast %cst_39 : f32 to vector<4x128xf32>
    %83 = arith.mulf %82, %81 : vector<4x128xf32>
    %cst_40 = arith.constant 5.000000e-01 : f32
    %84 = vector.broadcast %cst_40 : f32 to vector<4x128xf32>
    %85 = arith.addf %83, %84 : vector<4x128xf32>
    %86 = arith.subf %77, %66 : vector<4x128xf32>
    %87 = arith.mulf %85, %86 : vector<4x128xf32>
    %88 = arith.addf %66, %87 : vector<4x128xf32>
    %c0_41 = arith.constant 0 : index
    %c0_42 = arith.constant 0 : index
    %89 = vector.load %arg4[%c0_41, %c0_42] : memref<4x128xf32, #tpu.memory_space<vmem>>, vector<4x128xf32>
    tpu.vector_store %arg4[%c0_41, %c0_42], %88 {strides = array<i32>} : memref<4x128xf32, #tpu.memory_space<vmem>>, vector<4x128xf32>,
    return
  }
  func.func @transform_0(%arg0: i32) -> (i32, i32) {
    %c0_i32 = arith.constant 0 : i32
    %c0_i32_0 = arith.constant 0 : i32
    return %arg0, %c0_i32 : i32, i32
  }
  func.func @transform_1(%arg0: i32) -> (i32, i32, i32) {
    %c0_i32 = arith.constant 0 : i32
    %c0_i32_0 = arith.constant 0 : i32
    %c0_i32_1 = arith.constant 0 : i32
    %c0_i32_2 = arith.constant 0 : i32
    return %c0_i32, %c0_i32_0, %c0_i32_1 : i32, i32, i32
  }
  func.func @transform_2(%arg0: i32) -> (i32, i32, i32) {
    %c0_i32 = arith.constant 0 : i32
    %c0_i32_0 = arith.constant 0 : i32
    %c0_i32_1 = arith.constant 0 : i32
    %c0_i32_2 = arith.constant 0 : i32
    return %c0_i32, %c0_i32_0, %c0_i32_1 : i32, i32, i32
  }
  func.func @transform_3(%arg0: i32) -> (i32, i32) {
    %c0_i32 = arith.constant 0 : i32
    %c0_i32_0 = arith.constant 0 : i32
    return %arg0, %c0_i32 : i32, i32
  }
}

</mosaic_0001>

<llo_original>
// kernel: highwaynet_forward.1
$region0: #{highwaynet_forward.1}
  #allocation0 [shape = 'u32[]', space=smem, size = 0x4, offset = 0x4, fixed_abs, tag = 'smem constant byte address 0x4 - core index']
  #allocation1 [shape = 'u32[144,128]{1,0:T(1,128)}', space=vmem, size = 0x12000, scoped, tag = 'internal scratch']
  %s0 = inlined_call_operand.vmem [shape: f32[4,128], index: 0, kind: input, shape index: {}]
  %s1 = inlined_call_operand.hbm [shape: bf16[4,128,256], index: 1, kind: input, shape index: {}]
  %s2 = inlined_call_operand.vmem [shape: f32[4,1,256], index: 2, kind: input, shape index: {}]
  %s3 = inlined_call_operand.vmem [shape: f32[4,128], index: 3, kind: output, shape index: {}]
  %s4 = sld [smem:[#allocation0]]
  $region26: #{highwaynet_forward.1} parent=0
    _
  %s6 = ssub.s32 1, %s4
  %s7 = scalar_select 0, %s6, %s4
  $region1: #{highwaynet_forward.1} parent=0
    #allocation2 [shape = 'u8[262144]{0}', space=vmem, size = 0x40000, scoped, tag = 'input window, operand 1, single buffered']
    #allocation3 [shape = 's32[1]{0}', space=sflag, size = 0x4, scoped, tag = 'scoped memory for highwaynet_forward.1']
    %8 = vsyncpa [#allocation3], 0
    // Predicated region
    $region2: #{highwaynet_forward.1} parent=1 // pred_check
      _
    $region3: #{highwaynet_forward.1} parent=1 // pred_check_branch
      %10 = sbr.rel (0) target = $region5
    $region4: #{highwaynet_forward.1} parent=1 // pred_region
      _
    $region5: #{highwaynet_forward.1} parent=1 // pred_fallthru
      _
    // Predicated region
    $region6: #{highwaynet_forward.1} parent=1 // pred_check
      _
    $region7: #{highwaynet_forward.1} parent=1 // pred_check_branch
      %12 = sbr.rel (0) target = $region9
    $region8: #{highwaynet_forward.1} parent=1 // pred_region
      %s14 = ssub.s32 8192, 8192
      %15 = vsyncadd [#allocation3], %s14
      %s16 = sshll.u32 [#allocation2], 4
      %s17 = int_to_ptr.vmem [resolvable:$true] %s16
      %22 = dma.hbm_to_vmem [thread:$0]  %s1, 8192, %s17, [#allocation3], 128, 128, 8
    $region9: #{highwaynet_forward.1} parent=1 // pred_fallthru
      _
    // Predicated region
    $region10: #{highwaynet_forward.1} parent=1 // pred_check
      _
    $region11: #{highwaynet_forward.1} parent=1 // pred_check_branch
      %24 = sbr.rel (0) target = $region13
    $region12: #{highwaynet_forward.1} parent=1 // pred_region
      _
    $region13: #{highwaynet_forward.1} parent=1 // pred_fallthru
      _
    // Predicated region
    $region14: #{highwaynet_forward.1} parent=1 // pred_check
      _
    $region15: #{highwaynet_forward.1} parent=1 // pred_check_branch
      %26 = sbr.rel (0) target = $region17
    $region16: #{highwaynet_forward.1} parent=1 // pred_region
      %27 = dma.done [#allocation3], 8192
    $region17: #{highwaynet_forward.1} parent=1 // pred_fallthru
      _
    %v29 = vld [vmem:[%s0] sm:$0xf]
    %v30 = vpack.c.bf16 %v29, %v29
    %v31 = vld [vmem:[#allocation2] sm:$0xff]
    %v32 = vld [vmem:[#allocation2 + $0x8] sm:$0xff]
    %v33 = vld [vmem:[#allocation2 + $0x10] sm:$0xff]
    %v34 = vld [vmem:[#allocation2 + $0x18] sm:$0xff]
    %v35 = vld [vmem:[#allocation2 + $0x20] sm:$0xff]
    %v36 = vld [vmem:[#allocation2 + $0x28] sm:$0xff]
    %v37 = vld [vmem:[#allocation2 + $0x30] sm:$0xff]
    %v38 = vld [vmem:[#allocation2 + $0x38] sm:$0xff]
    %v39 = vld [vmem:[#allocation2 + $0x40] sm:$0xff]
    %v40 = vld [vmem:[#allocation2 + $0x48] sm:$0xff]
    %v41 = vld [vmem:[#allocation2 + $0x50] sm:$0xff]
    %v42 = vld [vmem:[#allocation2 + $0x58] sm:$0xff]
    %v43 = vld [vmem:[#allocation2 + $0x60] sm:$0xff]
    %v44 = vld [vmem:[#allocation2 + $0x68] sm:$0xff]
    %v45 = vld [vmem:[#allocation2 + $0x70] sm:$0xff]
    %v46 = vld [vmem:[#allocation2 + $0x78] sm:$0xff]
    %v47 = vld [vmem:[%s2] sm:$0x3]
    %v49 = vlaneseq
    %v50 = vshrl.u32 %v49, 7
    %v51 = vsub.s32 0, %v50
    %v52 = vrot.slane %v47, %v51
    %v53 = vlaneseq
    %v54 = vshrl.u32 %v53, 7
    %v55 = vsub.s32 1, %v54
    %v56 = vrot.slane %v47, %v55
    %v75 = vunpack.c.l.b16 %v31
    %v76 = vunpack.c.h.b16 %v31
    %v77 = vunpack.c.l.b16 %v32
    %v78 = vunpack.c.h.b16 %v32
    %v79 = vunpack.c.l.b16 %v33
    %v80 = vunpack.c.h.b16 %v33
    %v81 = vunpack.c.l.b16 %v34
    %v82 = vunpack.c.h.b16 %v34
    %v83 = vunpack.c.l.b16 %v35
    %v84 = vunpack.c.h.b16 %v35
    %v85 = vunpack.c.l.b16 %v36
    %v86 = vunpack.c.h.b16 %v36
    %v87 = vunpack.c.l.b16 %v37
    %v88 = vunpack.c.h.b16 %v37
    %v89 = vunpack.c.l.b16 %v38
    %v90 = vunpack.c.h.b16 %v38
    %v91 = vunpack.c.l.b16 %v39
    %v92 = vunpack.c.h.b16 %v39
    %v93 = vunpack.c.l.b16 %v40
    %v94 = vunpack.c.h.b16 %v40
    %v95 = vunpack.c.l.b16 %v41
    %v96 = vunpack.c.h.b16 %v41
    %v97 = vunpack.c.l.b16 %v42
    %v98 = vunpack.c.h.b16 %v42
    %v99 = vunpack.c.l.b16 %v43
    %v100 = vunpack.c.h.b16 %v43
    %v101 = vunpack.c.l.b16 %v44
    %v102 = vunpack.c.h.b16 %v44
    %v103 = vunpack.c.l.b16 %v45
    %v104 = vunpack.c.h.b16 %v45
    %v105 = vunpack.c.l.b16 %v46
    %v106 = vunpack.c.h.b16 %v46
    %v107 = vpack.c.b16 %v77, %v75
    %v108 = vpack.c.b16 %v78, %v76
    %v109 = vpack.c.b16 %v81, %v79
    %v110 = vpack.c.b16 %v82, %v80
    %v111 = vpack.c.b16 %v85, %v83
    %v112 = vpack.c.b16 %v86, %v84
    %v113 = vpack.c.b16 %v89, %v87
    %v114 = vpack.c.b16 %v90, %v88
    %v115 = vpack.c.b16 %v93, %v91
    %v116 = vpack.c.b16 %v94, %v92
    %v117 = vpack.c.b16 %v97, %v95
    %v118 = vpack.c.b16 %v98, %v96
    %v119 = vpack.c.b16 %v101, %v99
    %v120 = vpack.c.b16 %v102, %v100
    %v121 = vpack.c.b16 %v105, %v103
    %v122 = vpack.c.b16 %v106, %v104
    %139 = vmatprep.subr.bf16.mxu0 %v108
    %140 = vmatpush1.bf16.msra.mxu0 %v107
    %141 = vmatprep.subr.bf16.mxu0 %v110
    %142 = vmatpush1.bf16.msra.mxu0 %v109
    %143 = vmatprep.subr.bf16.mxu0 %v112
    %144 = vmatpush1.bf16.msra.mxu0 %v111
    %145 = vmatprep.subr.bf16.mxu0 %v114
    %146 = vmatpush1.bf16.msra.mxu0 %v113
    %147 = vmatprep.subr.bf16.mxu0 %v116
    %148 = vmatpush1.bf16.msra.mxu0 %v115
    %149 = vmatprep.subr.bf16.mxu0 %v118
    %150 = vmatpush1.bf16.msra.mxu0 %v117
    %151 = vmatprep.subr.bf16.mxu0 %v120
    %152 = vmatpush1.bf16.msra.mxu0 %v119
    %153 = vmatprep.subr.bf16.mxu0 %v122
    %154 = vmatpush1.bf16.msra.mxu0 %v121
    %155 = vmatprep.subr.bf16.mxu0 0
    %156 = vmatpush1.bf16.msra.mxu0 0
    %157 = vmatprep.subr.bf16.mxu0 0
    %158 = vmatpush1.bf16.msra.mxu0 0
    %159 = vmatprep.subr.bf16.mxu0 0
    %160 = vmatpush1.bf16.msra.mxu0 0
    %161 = vmatprep.subr.bf16.mxu0 0
    %162 = vmatpush1.bf16.msra.mxu0 0
    %163 = vmatprep.subr.bf16.mxu0 0
    %164 = vmatpush1.bf16.msra.mxu0 0
    %165 = vmatprep.subr.bf16.mxu0 0
    %166 = vmatpush1.bf16.msra.mxu0 0
    %167 = vmatprep.subr.bf16.mxu0 0
    %168 = vmatpush1.bf16.msra.mxu0 0
    %169 = vmatprep.subr.bf16.mxu0 0
    %170 = vmatpush1.bf16.msra.mxu0 0
    %171 = vmatprep.mubr.bf16.mxu0 0
    %172 = vmatmul.mubr.bf16.gmra.mrb[0].mxu0 %v30
    %v173 = vpop.f32.mrb[0].mxu0
    %v174 = vadd.f32 %v52, %v173
    %v175 = vpop.f32.mrb[0].mxu0
    %v176 = vadd.f32 %v56, %v175
    %v177 = vpop.f32.mrb[0].mxu0
    %v178 = vpop.f32.mrb[0].mxu0
    %179 = vdwg.mxu0
    %v180 = vmax.f32 %v174, 0.0
    %v181 = vmul.f32 %v176, 0.5
    %v182 = vtanh.pop %v181
    %v183 = vmul.f32 %v182, 0.5
    %v184 = vadd.f32 %v183, 0.5
    %v185 = vsub.f32 %v180, %v29
    %v186 = vmul.f32 %v184, %v185
    %v187 = vadd.f32 %v29, %v186
    %v188 = vpack.c.bf16 %v187, %v187
    %s189 = scalar_lea.vmem [#allocation2], 128
    %v190 = vld [vmem:[%s189] sm:$0xff]
    %v191 = vld [vmem:[%s189 + $0x8] sm:$0xff]
    %v192 = vld [vmem:[%s189 + $0x10] sm:$0xff]
    %v193 = vld [vmem:[%s189 + $0x18] sm:$0xff]
    %v194 = vld [vmem:[%s189 + $0x20] sm:$0xff]
    %v195 = vld [vmem:[%s189 + $0x28] sm:$0xff]
    %v196 = vld [vmem:[%s189 + $0x30] sm:$0xff]
    %v197 = vld [vmem:[%s189 + $0x38] sm:$0xff]
    %v198 = vld [vmem:[%s189 + $0x40] sm:$0xff]
    %v199 = vld [vmem:[%s189 + $0x48] sm:$0xff]
    %v200 = vld [vmem:[%s189 + $0x50] sm:$0xff]
    %v201 = vld [vmem:[%s189 + $0x58] sm:$0xff]
    %v202 = vld [vmem:[%s189 + $0x60] sm:$0xff]
    %v203 = vld [vmem:[%s189 + $0x68] sm:$0xff]
    %v204 = vld [vmem:[%s189 + $0x70] sm:$0xff]
    %v205 = vld [vmem:[%s189 + $0x78] sm:$0xff]
    %s206 = scalar_lea.vmem %s2, 2
    %v207 = vld [vmem:[%s206] sm:$0x3]
    %v209 = vlaneseq
    %v210 = vshrl.u32 %v209, 7
    %v211 = vsub.s32 0, %v210
    %v212 = vrot.slane %v207, %v211
    %v213 = vlaneseq
    %v214 = vshrl.u32 %v213, 7
    %v215 = vsub.s32 1, %v214
    %v216 = vrot.slane %v207, %v215
    %v235 = vunpack.c.l.b16 %v190
    %v236 = vunpack.c.h.b16 %v190
    %v237 = vunpack.c.l.b16 %v191
    %v238 = vunpack.c.h.b16 %v191
    %v239 = vunpack.c.l.b16 %v192
    %v240 = vunpack.c.h.b16 %v192
    %v241 = vunpack.c.l.b16 %v193
    %v242 = vunpack.c.h.b16 %v193
    %v243 = vunpack.c.l.b16 %v194
    %v244 = vunpack.c.h.b16 %v194
    %v245 = vunpack.c.l.b16 %v195
    %v246 = vunpack.c.h.b16 %v195
    %v247 = vunpack.c.l.b16 %v196
    %v248 = vunpack.c.h.b16 %v196
    %v249 = vunpack.c.l.b16 %v197
    %v250 = vunpack.c.h.b16 %v197
    %v251 = vunpack.c.l.b16 %v198
    %v252 = vunpack.c.h.b16 %v198
    %v253 = vunpack.c.l.b16 %v199
    %v254 = vunpack.c.h.b16 %v199
    %v255 = vunpack.c.l.b16 %v200
    %v256 = vunpack.c.h.b16 %v200
    %v257 = vunpack.c.l.b16 %v201
    %v258 = vunpack.c.h.b16 %v201
    %v259 = vunpack.c.l.b16 %v202
    %v260 = vunpack.c.h.b16 %v202
    %v261 = vunpack.c.l.b16 %v203
    %v262 = vunpack.c.h.b16 %v203
    %v263 = vunpack.c.l.b16 %v204
    %v264 = vunpack.c.h.b16 %v204
    %v265 = vunpack.c.l.b16 %v205
    %v266 = vunpack.c.h.b16 %v205
    %v267 = vpack.c.b16 %v237, %v235
    %v268 = vpack.c.b16 %v238, %v236
    %v269 = vpack.c.b16 %v241, %v239
    %v270 = vpack.c.b16 %v242, %v240
    %v271 = vpack.c.b16 %v245, %v243
    %v272 = vpack.c.b16 %v246, %v244
    %v273 = vpack.c.b16 %v249, %v247
    %v274 = vpack.c.b16 %v250, %v248
    %v275 = vpack.c.b16 %v253, %v251
    %v276 = vpack.c.b16 %v254, %v252
    %v277 = vpack.c.b16 %v257, %v255
    %v278 = vpack.c.b16 %v258, %v256
    %v279 = vpack.c.b16 %v261, %v259
    %v280 = vpack.c.b16 %v262, %v260
    %v281 = vpack.c.b16 %v265, %v263
    %v282 = vpack.c.b16 %v266, %v264
    %299 = vmatprep.subr.bf16.mxu0 %v268
    %300 = vmatpush1.bf16.msra.mxu0 %v267
    %301 = vmatprep.subr.bf16.mxu0 %v270
    %302 = vmatpush1.bf16.msra.mxu0 %v269
    %303 = vmatprep.subr.bf16.mxu0 %v272
    %304 = vmatpush1.bf16.msra.mxu0 %v271
    %305 = vmatprep.subr.bf16.mxu0 %v274
    %306 = vmatpush1.bf16.msra.mxu0 %v273
    %307 = vmatprep.subr.bf16.mxu0 %v276
    %308 = vmatpush1.bf16.msra.mxu0 %v275
    %309 = vmatprep.subr.bf16.mxu0 %v278
    %310 = vmatpush1.bf16.msra.mxu0 %v277
    %311 = vmatprep.subr.bf16.mxu0 %v280
    %312 = vmatpush1.bf16.msra.mxu0 %v279
    %313 = vmatprep.subr.bf16.mxu0 %v282
    %314 = vmatpush1.bf16.msra.mxu0 %v281
    %315 = vmatprep.subr.bf16.mxu0 0
    %316 = vmatpush1.bf16.msra.mxu0 0
    %317 = vmatprep.subr.bf16.mxu0 0
    %318 = vmatpush1.bf16.msra.mxu0 0
    %319 = vmatprep.subr.bf16.mxu0 0
    %320 = vmatpush1.bf16.msra.mxu0 0
    %321 = vmatprep.subr.bf16.mxu0 0
    %322 = vmatpush1.bf16.msra.mxu0 0
    %323 = vmatprep.subr.bf16.mxu0 0
    %324 = vmatpush1.bf16.msra.mxu0 0
    %325 = vmatprep.subr.bf16.mxu0 0
    %326 = vmatpush1.bf16.msra.mxu0 0
    %327 = vmatprep.subr.bf16.mxu0 0
    %328 = vmatpush1.bf16.msra.mxu0 0
    %329 = vmatprep.subr.bf16.mxu0 0
    %330 = vmatpush1.bf16.msra.mxu0 0
    %331 = vmatprep.mubr.bf16.mxu0 0
    %332 = vmatmul.mubr.bf16.gmra.mrb[0].mxu0 %v188
    %v333 = vpop.f32.mrb[0].mxu0
    %v334 = vadd.f32 %v212, %v333
    %v335 = vpop.f32.mrb[0].mxu0
    %v336 = vadd.f32 %v216, %v335
    %v337 = vpop.f32.mrb[0].mxu0
    %v338 = vpop.f32.mrb[0].mxu0
    %339 = vdwg.mxu0
    %v340 = vmax.f32 %v334, 0.0
    %v341 = vmul.f32 %v336, 0.5
    %v342 = vtanh.pop %v341
    %v343 = vmul.f32 %v342, 0.5
    %v344 = vadd.f32 %v343, 0.5
    %v345 = vsub.f32 %v340, %v187
    %v346 = vmul.f32 %v344, %v345
    %v347 = vadd.f32 %v187, %v346
    %v348 = vpack.c.bf16 %v347, %v347
    %s349 = scalar_lea.vmem [#allocation2], 256
    %v350 = vld [vmem:[%s349] sm:$0xff]
    %v351 = vld [vmem:[%s349 + $0x8] sm:$0xff]
    %v352 = vld [vmem:[%s349 + $0x10] sm:$0xff]
    %v353 = vld [vmem:[%s349 + $0x18] sm:$0xff]
    %v354 = vld [vmem:[%s349 + $0x20] sm:$0xff]
    %v355 = vld [vmem:[%s349 + $0x28] sm:$0xff]
    %v356 = vld [vmem:[%s349 + $0x30] sm:$0xff]
    %v357 = vld [vmem:[%s349 + $0x38] sm:$0xff]
    %v358 = vld [vmem:[%s349 + $0x40] sm:$0xff]
    %v359 = vld [vmem:[%s349 + $0x48] sm:$0xff]
    %v360 = vld [vmem:[%s349 + $0x50] sm:$0xff]
    %v361 = vld [vmem:[%s349 + $0x58] sm:$0xff]
    %v362 = vld [vmem:[%s349 + $0x60] sm:$0xff]
    %v363 = vld [vmem:[%s349 + $0x68] sm:$0xff]
    %v364 = vld [vmem:[%s349 + $0x70] sm:$0xff]
    %v365 = vld [vmem:[%s349 + $0x78] sm:$0xff]
    %s366 = scalar_lea.vmem %s2, 4
    %v367 = vld [vmem:[%s366] sm:$0x3]
    %v369 = vlaneseq
    %v370 = vshrl.u32 %v369, 7
    %v371 = vsub.s32 0, %v370
    %v372 = vrot.slane %v367, %v371
    %v373 = vlaneseq
    %v374 = vshrl.u32 %v373, 7
    %v375 = vsub.s32 1, %v374
    %v376 = vrot.slane %v367, %v375
    %v395 = vunpack.c.l.b16 %v350
    %v396 = vunpack.c.h.b16 %v350
    %v397 = vunpack.c.l.b16 %v351
    %v398 = vunpack.c.h.b16 %v351
    %v399 = vunpack.c.l.b16 %v352
    %v400 = vunpack.c.h.b16 %v352
    %v401 = vunpack.c.l.b16 %v353
    %v402 = vunpack.c.h.b16 %v353
    %v403 = vunpack.c.l.b16 %v354
    %v404 = vunpack.c.h.b16 %v354
    %v405 = vunpack.c.l.b16 %v355
    %v406 = vunpack.c.h.b16 %v355
    %v407 = vunpack.c.l.b16 %v356
    %v408 = vunpack.c.h.b16 %v356
    %v409 = vunpack.c.l.b16 %v357
    %v410 = vunpack.c.h.b16 %v357
    %v411 = vunpack.c.l.b16 %v358
    %v412 = vunpack.c.h.b16 %v358
    %v413 = vunpack.c.l.b16 %v359
    %v414 = vunpack.c.h.b16 %v359
    %v415 = vunpack.c.l.b16 %v360
    %v416 = vunpack.c.h.b16 %v360
    %v417 = vunpack.c.l.b16 %v361
    %v418 = vunpack.c.h.b16 %v361
    %v419 = vunpack.c.l.b16 %v362
    %v420 = vunpack.c.h.b16 %v362
    %v421 = vunpack.c.l.b16 %v363
    %v422 = vunpack.c.h.b16 %v363
    %v423 = vunpack.c.l.b16 %v364
    %v424 = vunpack.c.h.b16 %v364
    %v425 = vunpack.c.l.b16 %v365
    %v426 = vunpack.c.h.b16 %v365
    %v427 = vpack.c.b16 %v397, %v395
    %v428 = vpack.c.b16 %v398, %v396
    %v429 = vpack.c.b16 %v401, %v399
    %v430 = vpack.c.b16 %v402, %v400
    %v431 = vpack.c.b16 %v405, %v403
    %v432 = vpack.c.b16 %v406, %v404
    %v433 = vpack.c.b16 %v409, %v407
    %v434 = vpack.c.b16 %v410, %v408
    %v435 = vpack.c.b16 %v413, %v411
    %v436 = vpack.c.b16 %v414, %v412
    %v437 = vpack.c.b16 %v417, %v415
    %v438 = vpack.c.b16 %v418, %v416
    %v439 = vpack.c.b16 %v421, %v419
    %v440 = vpack.c.b16 %v422, %v420
    %v441 = vpack.c.b16 %v425, %v423
    %v442 = vpack.c.b16 %v426, %v424
    %459 = vmatprep.subr.bf16.mxu0 %v428
    %460 = vmatpush1.bf16.msra.mxu0 %v427
    %461 = vmatprep.subr.bf16.mxu0 %v430
    %462 = vmatpush1.bf16.msra.mxu0 %v429
    %463 = vmatprep.subr.bf16.mxu0 %v432
    %464 = vmatpush1.bf16.msra.mxu0 %v431
    %465 = vmatprep.subr.bf16.mxu0 %v434
    %466 = vmatpush1.bf16.msra.mxu0 %v433
    %467 = vmatprep.subr.bf16.mxu0 %v436
    %468 = vmatpush1.bf16.msra.mxu0 %v435
    %469 = vmatprep.subr.bf16.mxu0 %v438
    %470 = vmatpush1.bf16.msra.mxu0 %v437
    %471 = vmatprep.subr.bf16.mxu0 %v440
    %472 = vmatpush1.bf16.msra.mxu0 %v439
    %473 = vmatprep.subr.bf16.mxu0 %v442
    %474 = vmatpush1.bf16.msra.mxu0 %v441
    %475 = vmatprep.subr.bf16.mxu0 0
    %476 = vmatpush1.bf16.msra.mxu0 0
    %477 = vmatprep.subr.bf16.mxu0 0
    %478 = vmatpush1.bf16.msra.mxu0 0
    %479 = vmatprep.subr.bf16.mxu0 0
    %480 = vmatpush1.bf16.msra.mxu0 0
    %481 = vmatprep.subr.bf16.mxu0 0
    %482 = vmatpush1.bf16.msra.mxu0 0
    %483 = vmatprep.subr.bf16.mxu0 0
    %484 = vmatpush1.bf16.msra.mxu0 0
    %485 = vmatprep.subr.bf16.mxu0 0
    %486 = vmatpush1.bf16.msra.mxu0 0
    %487 = vmatprep.subr.bf16.mxu0 0
    %488 = vmatpush1.bf16.msra.mxu0 0
    %489 = vmatprep.subr.bf16.mxu0 0
    %490 = vmatpush1.bf16.msra.mxu0 0
    %491 = vmatprep.mubr.bf16.mxu0 0
    %492 = vmatmul.mubr.bf16.gmra.mrb[0].mxu0 %v348
    %v493 = vpop.f32.mrb[0].mxu0
    %v494 = vadd.f32 %v372, %v493
    %v495 = vpop.f32.mrb[0].mxu0
    %v496 = vadd.f32 %v376, %v495
    %v497 = vpop.f32.mrb[0].mxu0
    %v498 = vpop.f32.mrb[0].mxu0
    %499 = vdwg.mxu0
    %v500 = vmax.f32 %v494, 0.0
    %v501 = vmul.f32 %v496, 0.5
    %v502 = vtanh.pop %v501
    %v503 = vmul.f32 %v502, 0.5
    %v504 = vadd.f32 %v503, 0.5
    %v505 = vsub.f32 %v500, %v347
    %v506 = vmul.f32 %v504, %v505
    %v507 = vadd.f32 %v347, %v506
    %v508 = vpack.c.bf16 %v507, %v507
    %s509 = scalar_lea.vmem [#allocation2], 384
    %v510 = vld [vmem:[%s509] sm:$0xff]
    %v511 = vld [vmem:[%s509 + $0x8] sm:$0xff]
    %v512 = vld [vmem:[%s509 + $0x10] sm:$0xff]
    %v513 = vld [vmem:[%s509 + $0x18] sm:$0xff]
    %v514 = vld [vmem:[%s509 + $0x20] sm:$0xff]
    %v515 = vld [vmem:[%s509 + $0x28] sm:$0xff]
    %v516 = vld [vmem:[%s509 + $0x30] sm:$0xff]
    %v517 = vld [vmem:[%s509 + $0x38] sm:$0xff]
    %v518 = vld [vmem:[%s509 + $0x40] sm:$0xff]
    %v519 = vld [vmem:[%s509 + $0x48] sm:$0xff]
    %v520 = vld [vmem:[%s509 + $0x50] sm:$0xff]
    %v521 = vld [vmem:[%s509 + $0x58] sm:$0xff]
    %v522 = vld [vmem:[%s509 + $0x60] sm:$0xff]
    %v523 = vld [vmem:[%s509 + $0x68] sm:$0xff]
    %v524 = vld [vmem:[%s509 + $0x70] sm:$0xff]
    %v525 = vld [vmem:[%s509 + $0x78] sm:$0xff]
    %s526 = scalar_lea.vmem %s2, 6
    %v527 = vld [vmem:[%s526] sm:$0x3]
    %v529 = vlaneseq
    %v530 = vshrl.u32 %v529, 7
    %v531 = vsub.s32 0, %v530
    %v532 = vrot.slane %v527, %v531
    %v533 = vlaneseq
    %v534 = vshrl.u32 %v533, 7
    %v535 = vsub.s32 1, %v534
    %v536 = vrot.slane %v527, %v535
    %v555 = vunpack.c.l.b16 %v510
    %v556 = vunpack.c.h.b16 %v510
    %v557 = vunpack.c.l.b16 %v511
    %v558 = vunpack.c.h.b16 %v511
    %v559 = vunpack.c.l.b16 %v512
    %v560 = vunpack.c.h.b16 %v512
    %v561 = vunpack.c.l.b16 %v513
    %v562 = vunpack.c.h.b16 %v513
    %v563 = vunpack.c.l.b16 %v514
    %v564 = vunpack.c.h.b16 %v514
    %v565 = vunpack.c.l.b16 %v515
    %v566 = vunpack.c.h.b16 %v515
    %v567 = vunpack.c.l.b16 %v516
    %v568 = vunpack.c.h.b16 %v516
    %v569 = vunpack.c.l.b16 %v517
    %v570 = vunpack.c.h.b16 %v517
    %v571 = vunpack.c.l.b16 %v518
    %v572 = vunpack.c.h.b16 %v518
    %v573 = vunpack.c.l.b16 %v519
    %v574 = vunpack.c.h.b16 %v519
    %v575 = vunpack.c.l.b16 %v520
    %v576 = vunpack.c.h.b16 %v520
    %v577 = vunpack.c.l.b16 %v521
    %v578 = vunpack.c.h.b16 %v521
    %v579 = vunpack.c.l.b16 %v522
    %v580 = vunpack.c.h.b16 %v522
    %v581 = vunpack.c.l.b16 %v523
    %v582 = vunpack.c.h.b16 %v523
    %v583 = vunpack.c.l.b16 %v524
    %v584 = vunpack.c.h.b16 %v524
    %v585 = vunpack.c.l.b16 %v525
    %v586 = vunpack.c.h.b16 %v525
    %v587 = vpack.c.b16 %v557, %v555
    %v588 = vpack.c.b16 %v558, %v556
    %v589 = vpack.c.b16 %v561, %v559
    %v590 = vpack.c.b16 %v562, %v560
    %v591 = vpack.c.b16 %v565, %v563
    %v592 = vpack.c.b16 %v566, %v564
    %v593 = vpack.c.b16 %v569, %v567
    %v594 = vpack.c.b16 %v570, %v568
    %v595 = vpack.c.b16 %v573, %v571
    %v596 = vpack.c.b16 %v574, %v572
    %v597 = vpack.c.b16 %v577, %v575
    %v598 = vpack.c.b16 %v578, %v576
    %v599 = vpack.c.b16 %v581, %v579
    %v600 = vpack.c.b16 %v582, %v580
    %v601 = vpack.c.b16 %v585, %v583
    %v602 = vpack.c.b16 %v586, %v584
    %619 = vmatprep.subr.bf16.mxu0 %v588
    %620 = vmatpush1.bf16.msra.mxu0 %v587
    %621 = vmatprep.subr.bf16.mxu0 %v590
    %622 = vmatpush1.bf16.msra.mxu0 %v589
    %623 = vmatprep.subr.bf16.mxu0 %v592
    %624 = vmatpush1.bf16.msra.mxu0 %v591
    %625 = vmatprep.subr.bf16.mxu0 %v594
    %626 = vmatpush1.bf16.msra.mxu0 %v593
    %627 = vmatprep.subr.bf16.mxu0 %v596
    %628 = vmatpush1.bf16.msra.mxu0 %v595
    %629 = vmatprep.subr.bf16.mxu0 %v598
    %630 = vmatpush1.bf16.msra.mxu0 %v597
    %631 = vmatprep.subr.bf16.mxu0 %v600
    %632 = vmatpush1.bf16.msra.mxu0 %v599
    %633 = vmatprep.subr.bf16.mxu0 %v602
    %634 = vmatpush1.bf16.msra.mxu0 %v601
    %635 = vmatprep.subr.bf16.mxu0 0
    %636 = vmatpush1.bf16.msra.mxu0 0
    %637 = vmatprep.subr.bf16.mxu0 0
    %638 = vmatpush1.bf16.msra.mxu0 0
    %639 = vmatprep.subr.bf16.mxu0 0
    %640 = vmatpush1.bf16.msra.mxu0 0
    %641 = vmatprep.subr.bf16.mxu0 0
    %642 = vmatpush1.bf16.msra.mxu0 0
    %643 = vmatprep.subr.bf16.mxu0 0
    %644 = vmatpush1.bf16.msra.mxu0 0
    %645 = vmatprep.subr.bf16.mxu0 0
    %646 = vmatpush1.bf16.msra.mxu0 0
    %647 = vmatprep.subr.bf16.mxu0 0
    %648 = vmatpush1.bf16.msra.mxu0 0
    %649 = vmatprep.subr.bf16.mxu0 0
    %650 = vmatpush1.bf16.msra.mxu0 0
    %651 = vmatprep.mubr.bf16.mxu0 0
    %652 = vmatmul.mubr.bf16.gmra.mrb[0].mxu0 %v508
    %v653 = vpop.f32.mrb[0].mxu0
    %v654 = vadd.f32 %v532, %v653
    %v655 = vpop.f32.mrb[0].mxu0
    %v656 = vadd.f32 %v536, %v655
    %v657 = vpop.f32.mrb[0].mxu0
    %v658 = vpop.f32.mrb[0].mxu0
    %659 = vdwg.mxu0
    %v660 = vmax.f32 %v654, 0.0
    %v661 = vmul.f32 %v656, 0.5
    %v662 = vtanh.pop %v661
    %v663 = vmul.f32 %v662, 0.5
    %v664 = vadd.f32 %v663, 0.5
    %v665 = vsub.f32 %v660, %v507
    %v666 = vmul.f32 %v664, %v665
    %v667 = vadd.f32 %v507, %v666
    %668 = vst [vmem:[%s3] sm:$0xf] %v667
    // Predicated region
    $region18: #{highwaynet_forward.1} parent=1 // pred_check
      _
    $region19: #{highwaynet_forward.1} parent=1 // pred_check_branch
      %670 = sbr.rel (0) target = $region21
    $region20: #{highwaynet_forward.1} parent=1 // pred_region
      _
    $region21: #{highwaynet_forward.1} parent=1 // pred_fallthru
      _
    // Predicated region
    $region22: #{highwaynet_forward.1} parent=1 // pred_check
      _
    $region23: #{highwaynet_forward.1} parent=1 // pred_check_branch
      %672 = sbr.rel (0) target = $region25
    $region24: #{highwaynet_forward.1} parent=1 // pred_region
      _
    $region25: #{highwaynet_forward.1} parent=1 // pred_fallthru
      _
    %673 = vsyncpa [#allocation3], 1

</llo_original>
